<compile_context>
chip_gen: v7x
topology: tpu7x:2x2x1
jax: 0.10.0
libtpu: 0.0.40
codegen_flags: <defaults>
</compile_context>

<pallas_src>
import functools

import jax
import jax.numpy as jnp
from jax import lax
from jax.experimental import pallas as pl
from jax.experimental.pallas import tpu as pltpu

_EPS = 1e-8  # matches torch.nn.CosineSimilarity default eps
_MiB = 1024 * 1024


def _round_up(x: int, m: int) -> int:
    return (x + m - 1) // m * m


def _tpu_info():
    try:
        return pltpu.get_tpu_info()
    except Exception:  # not on TPU / API unavailable -> safe defaults
        return None


def _detect_num_tensorcores() -> int:
    info = _tpu_info()
    if info is not None:
        for name in ("num_cores", "num_tensorcores", "tensor_core_count",
                     "num_cores_per_chip", "cores_per_chip", "core_count"):
            v = getattr(info, name, None)
            if isinstance(v, int) and v > 0:
                return v
    return 1  # conservative: single-TC path is correct everywhere


def _detect_vmem_bytes() -> int:
    info = _tpu_info()
    if info is not None:
        v = getattr(info, "vmem_capacity_bytes", None)
        if isinstance(v, int) and v > 0:
            return v
    return 128 * _MiB


def _cosine_loss_kernel(pred_ref, target_ref, out_ref, acc_ref, *,
                        n_rows: int, tile_n: int, blocks_per_core: int,
                        multi_core: bool):
    if multi_core:
        c = pl.program_id(0)          # TensorCore split (core-parallel axis)
        i = pl.program_id(1)          # row-tile index within this core
        n_i = pl.num_programs(1)
    else:
        c = 0
        i = pl.program_id(0)
        n_i = pl.num_programs(0)

    @pl.when(i == 0)
    def _init():
        acc_ref[...] = jnp.zeros_like(acc_ref)

    # Hoisted f32 casts: one convert of each operand per tile (HBM traffic
    # stays in the input dtype; accumulation in f32).
    pf = pred_ref[...].astype(jnp.float32)
    tf = target_ref[...].astype(jnp.float32)

    dot = jnp.sum(pf * tf, axis=-1, keepdims=True)          # (tile_n, 1)
    ss_p = jnp.sum(pf * pf, axis=-1, keepdims=True)
    ss_t = jnp.sum(tf * tf, axis=-1, keepdims=True)

    # max(sqrt(a)*sqrt(b), eps) == sqrt(max(a*b, eps^2)) for a, b >= 0.
    cos = dot * lax.rsqrt(jnp.maximum(ss_p * ss_t, jnp.float32(_EPS * _EPS)))

    # Mask rows past the end of the array (partial last tile / clamped tail
    # blocks).  Keep the select (not multiply-by-mask) so garbage rows can't
    # leak NaN/Inf into the sum.
    row0 = (c * blocks_per_core + i) * tile_n
    rows = row0 + lax.broadcasted_iota(jnp.int32, cos.shape, 0)
    cos = jnp.where(rows < n_rows, cos, jnp.float32(0.0))

    acc_ref[...] += jnp.sum(cos, keepdims=True)              # (1, 1) f32

    @pl.when(i == n_i - 1)
    def _finalize():
        # Per-core partial sum of cosines, broadcast into a lane-dense block.
        out_ref[...] = jnp.broadcast_to(acc_ref[...], out_ref.shape)


def cosine_similarity_loss(pred: jax.Array, target: jax.Array, *,
                           tile_bytes: int | None = None,
                           num_cores: int | None = None,
                           core_semantics=None) -> jax.Array:
    """1 - mean(cosine_similarity(pred, target, dim=-1)); returns f32 scalar."""
    assert pred.shape == target.shape, (pred.shape, target.shape)
    d = pred.shape[-1]
    p2 = pred.reshape(-1, d)
    t2 = target.reshape(-1, d)
    n_rows = p2.shape[0]
    itemsize = p2.dtype.itemsize

    # ---- chip-aware defaults -------------------------------------------------
    vmem_cap = _detect_vmem_bytes()
    if num_cores is None:
        num_cores = _detect_num_tensorcores()
    if tile_bytes is None:
        # 64 MiB VMEM (v7x): 8 MiB/input (2 inputs x 2 buffers = 32 MiB).
        # 128 MiB VMEM (v5e/v6e): 16 MiB/input (= 64 MiB double-buffered).
        tile_bytes = 8 * _MiB if vmem_cap <= 64 * _MiB else 16 * _MiB
    vmem_limit = int(min(vmem_cap * 3 // 4,
                         max(32 * _MiB, 4 * tile_bytes + 16 * _MiB)))

    # Row-tile size from the lane-PADDED width (VMEM tiles pad D up to 128
    # lanes), rounded to a sublane multiple of 8, capped at (rounded-up) N.
    d_pad = _round_up(d, 128)
    rows = max(8, (tile_bytes // (d_pad * itemsize)) // 8 * 8)
    tile_n = int(min(rows, _round_up(n_rows, 8)))

    n_blocks = pl.cdiv(n_rows, tile_n)
    inv_n = 1.0 / float(n_rows)

    # ---- grid construction ---------------------------------------------------
    multi_core = (num_cores > 1) and (n_blocks > 1)
    if multi_core:
        blocks_per_core = pl.cdiv(n_blocks, num_cores)
        if core_semantics is None:
            # Guarantee the row split shards across TensorCores on v7x.
            core_semantics = getattr(pltpu, "CORE_PARALLEL", "parallel")
        grid = (num_cores, blocks_per_core)
        dim_sem = (core_semantics, "arbitrary")
        out_shape = jax.ShapeDtypeStruct((num_cores, 8, 128), jnp.float32)

        def in_map(c, i):
            # Clamp so a core's (possibly empty) tail re-reads a valid block;
            # its rows are masked to zero contribution inside the kernel.
            return (jnp.minimum(c * blocks_per_core + i, n_blocks - 1), 0)

        def out_map(c, i):
            return (c, 0, 0)
    else:
        # Single-TC chips (v5e/v6e): plain 1-D accumulation loop, no clamp.
        blocks_per_core = n_blocks
        grid = (n_blocks,)
        dim_sem = ("arbitrary",)
        out_shape = jax.ShapeDtypeStruct((1, 8, 128), jnp.float32)

        def in_map(i):
            return (i, 0)

        def out_map(i):
            return (0, 0, 0)

    kernel = functools.partial(
        _cosine_loss_kernel,
        n_rows=n_rows, tile_n=tile_n,
        blocks_per_core=blocks_per_core, multi_core=multi_core)

    out_bytes = out_shape.shape[0] * 8 * 128 * 4
    partials = pl.pallas_call(
        kernel,
        out_shape=out_shape,
        grid_spec=pltpu.PrefetchScalarGridSpec(
            num_scalar_prefetch=0,
            grid=grid,
            in_specs=[pl.BlockSpec((tile_n, d), in_map),
                      pl.BlockSpec((tile_n, d), in_map)],
            out_specs=pl.BlockSpec((1, 8, 128), out_map),
            scratch_shapes=[pltpu.VMEM((1, 1), jnp.float32)]),
        compiler_params=pltpu.CompilerParams(
            dimension_semantics=dim_sem,
            vmem_limit_bytes=vmem_limit),
        cost_estimate=pl.CostEstimate(
            flops=6 * n_rows * d,
            transcendentals=n_rows,
            bytes_accessed=2 * n_rows * d * itemsize + out_bytes),
    )(p2, t2)

    # Cross-block accumulation is f32; fine for realistic N.
    total = jnp.sum(partials[:, 0, 0])
    return jnp.float32(1.0) - total * jnp.float32(inv_n)


def _reference(pred, target, eps=_EPS):
    p = pred.astype(jnp.float32)
    t = target.astype(jnp.float32)
    dot = jnp.sum(p * t, axis=-1)
    denom = jnp.maximum(
        jnp.linalg.norm(p, axis=-1) * jnp.linalg.norm(t, axis=-1), eps)
    return 1.0 - jnp.mean(dot / denom)


if __name__ == "__main__":
    key = jax.random.PRNGKey(0)
    k1, k2, k3, k4 = jax.random.split(key, 4)

    # Case 1: batch=2, seq=8, hidden=256; auto chip-aware settings
    # (single-TC chips take the simplified 1-D grid path).
    pred1 = jax.random.normal(k1, (2, 8, 256), dtype=jnp.float32)
    tgt1 = jax.random.normal(k2, (2, 8, 256), dtype=jnp.float32)
    loss1 = cosine_similarity_loss(pred1, tgt1)
    jax.block_until_ready(loss1)
    ref1 = _reference(pred1, tgt1)
    assert jnp.allclose(loss1, ref1, atol=1e-5, rtol=1e-5), (loss1, ref1)

    # Case 2: non-multiple-of-tile row count + tiny tiles exercising the
    # multi-step grid, the 2-way core-split code path (with the portable
    # "parallel" semantic so it runs on any chip), clamping and tail masking.
    pred2 = jax.random.normal(k3, (4, 37, 256), dtype=jnp.float32)
    tgt2 = jax.random.normal(k4, (4, 37, 256), dtype=jnp.float32)
    loss2 = cosine_similarity_loss(pred2, tgt2, tile_bytes=16 * 1024,
                                   num_cores=2, core_semantics="parallel")
    jax.block_until_ready(loss2)
    ref2 = _reference(pred2, tgt2)
    assert jnp.allclose(loss2, ref2, atol=1e-5, rtol=1e-5), (loss2, ref2)

    # Case 3: bf16 inputs through the explicit single-core 1-D grid path
    # (native-dtype DMA + in-kernel f32 cast).
    pred3 = jax.random.normal(k1, (8, 512), dtype=jnp.bfloat16)
    tgt3 = jax.random.normal(k2, (8, 512), dtype=jnp.bfloat16)
    loss3 = cosine_similarity_loss(pred3, tgt3, num_cores=1)
    jax.block_until_ready(loss3)
    ref3 = _reference(pred3, tgt3)
    assert jnp.allclose(loss3, ref3, atol=1e-4, rtol=1e-4), (loss3, ref3)

    print("KERNEL_OK")
</pallas_src>

<mosaic_0001>
module attributes {stable_mosaic.version = 11 : i64} {
  func.func @_cosine_loss_kernel(%arg0: i32, %arg1: memref<16x256xf32, #tpu.memory_space<vmem>>, %arg2: memref<16x256xf32, #tpu.memory_space<vmem>>, %arg3: memref<1x8x128xf32, #tpu.memory_space<vmem>>, %arg4: memref<1x1xf32, #tpu.memory_space<vmem>>) attributes {dimension_semantics = [#tpu.dimension_semantics<arbitrary>], iteration_bounds = array<i64: 1>, scalar_prefetch = 0 : i64, scratch_operands = 1 : i64, tpu.core_type = #tpu.core_type<tc>, window_params = [{transform_indices = @transform_0, window_bounds = array<i64: 16, 256>}, {transform_indices = @transform_1, window_bounds = array<i64: 16, 256>}, {pipeline_mode = #tpu.pipeline_mode<synchronous>, transform_indices = @transform_2, window_bounds = array<i64: 1, 8, 128>}]} {
    %c0_i32 = arith.constant 0 : i32
    %0 = arith.cmpi eq, %arg0, %c0_i32 : i32
    %1 = arith.extui %0 : i1 to i32
    %c0_i32_0 = arith.constant 0 : i32
    %2 = arith.cmpi ne, %1, %c0_i32_0 : i32
    scf.if %2 {
      %cst_17 = arith.constant 0.000000e+00 : f32
      %39 = vector.broadcast %cst_17 : f32 to vector<1x1xf32>
      %c0_18 = arith.constant 0 : index
      %c0_19 = arith.constant 0 : index
      %40 = vector.load %arg4[%c0_18, %c0_19] : memref<1x1xf32, #tpu.memory_space<vmem>>, vector<1x1xf32>
      tpu.vector_store %arg4[%c0_18, %c0_19], %39 {strides = array<i32>} : memref<1x1xf32, #tpu.memory_space<vmem>>, vector<1x1xf32>,
    } else {
    }
    %c0 = arith.constant 0 : index
    %c0_1 = arith.constant 0 : index
    %3 = vector.load %arg1[%c0, %c0_1] : memref<16x256xf32, #tpu.memory_space<vmem>>, vector<16x256xf32>
    %c0_2 = arith.constant 0 : index
    %c0_3 = arith.constant 0 : index
    %4 = vector.load %arg2[%c0_2, %c0_3] : memref<16x256xf32, #tpu.memory_space<vmem>>, vector<16x256xf32>
    %5 = arith.mulf %3, %4 : vector<16x256xf32>
    %cst = arith.constant dense<0.000000e+00> : vector<16xf32>
    %6 = vector.multi_reduction <add>, %5, %cst [1] : vector<16x256xf32> to vector<16xf32>
    %7 = vector.shape_cast %6 : vector<16xf32> to vector<16x1xf32>
    %8 = arith.mulf %3, %3 : vector<16x256xf32>
    %cst_4 = arith.constant dense<0.000000e+00> : vector<16xf32>
    %9 = vector.multi_reduction <add>, %8, %cst_4 [1] : vector<16x256xf32> to vector<16xf32>
    %10 = vector.shape_cast %9 : vector<16xf32> to vector<16x1xf32>
    %11 = arith.mulf %4, %4 : vector<16x256xf32>
    %cst_5 = arith.constant dense<0.000000e+00> : vector<16xf32>
    %12 = vector.multi_reduction <add>, %11, %cst_5 [1] : vector<16x256xf32> to vector<16xf32>
    %13 = vector.shape_cast %12 : vector<16xf32> to vector<16x1xf32>
    %14 = arith.mulf %10, %13 : vector<16x1xf32>
    %cst_6 = arith.constant 1.000000e-16 : f32
    %15 = vector.broadcast %cst_6 : f32 to vector<16x1xf32>
    %16 = arith.maximumf %14, %15 : vector<16x1xf32>
    %17 = math.rsqrt %16 : vector<16x1xf32>
    %18 = arith.mulf %7, %17 : vector<16x1xf32>
    %c0_i32_7 = arith.constant 0 : i32
    %19 = arith.addi %c0_i32_7, %arg0 : i32
    %c16_i32 = arith.constant 16 : i32
    %20 = arith.muli %19, %c16_i32 : i32
    %21 = tpu.iota {dimensions = array<i32: 0>} : vector<16x1xi32>
    %22 = vector.broadcast %20 : i32 to vector<16x1xi32>
    %23 = arith.addi %22, %21 : vector<16x1xi32>
    %c16_i32_8 = arith.constant 16 : i32
    %24 = vector.broadcast %c16_i32_8 : i32 to vector<16x1xi32>
    %25 = arith.cmpi slt, %23, %24 : vector<16x1xi32>
    %cst_9 = arith.constant 0.000000e+00 : f32
    %26 = vector.broadcast %cst_9 : f32 to vector<16x1xf32>
    %27 = arith.select %25, %18, %26 : vector<16x1xi1>, vector<16x1xf32>
    %c0_10 = arith.constant 0 : index
    %c0_11 = arith.constant 0 : index
    %28 = vector.load %arg4[%c0_10, %c0_11] : memref<1x1xf32, #tpu.memory_space<vmem>>, vector<1x1xf32>
    %29 = vector.shape_cast %27 : vector<16x1xf32> to vector<1x16x1xf32>
    %cst_12 = arith.constant dense<0.000000e+00> : vector<1xf32>
    %30 = vector.multi_reduction <add>, %29, %cst_12 [1, 2] : vector<1x16x1xf32> to vector<1xf32>
    %31 = vector.shape_cast %30 : vector<1xf32> to vector<1x1x1xf32>
    %32 = vector.extract %31[0, 0, 0] : f32 from vector<1x1x1xf32>
    %33 = vector.broadcast %32 : f32 to vector<1x1xf32>
    %34 = arith.addf %28, %33 : vector<1x1xf32>
    %c0_13 = arith.constant 0 : index
    %c0_14 = arith.constant 0 : index
    %35 = vector.load %arg4[%c0_13, %c0_14] : memref<1x1xf32, #tpu.memory_space<vmem>>, vector<1x1xf32>
    tpu.vector_store %arg4[%c0_13, %c0_14], %34 {strides = array<i32>} : memref<1x1xf32, #tpu.memory_space<vmem>>, vector<1x1xf32>,
    %c0_i32_15 = arith.constant 0 : i32
    %36 = arith.cmpi eq, %arg0, %c0_i32_15 : i32
    %37 = arith.extui %36 : i1 to i32
    %c0_i32_16 = arith.constant 0 : i32
    %38 = arith.cmpi ne, %37, %c0_i32_16 : i32
    scf.if %38 {
      %c0_17 = arith.constant 0 : index
      %c0_18 = arith.constant 0 : index
      %39 = vector.load %arg4[%c0_17, %c0_18] : memref<1x1xf32, #tpu.memory_space<vmem>>, vector<1x1xf32>
      %40 = vector.shape_cast %39 : vector<1x1xf32> to vector<1x1x1xf32>
      %41 = vector.broadcast %40 : vector<1x1x1xf32> to vector<1x8x128xf32>
      %c0_19 = arith.constant 0 : index
      %c0_20 = arith.constant 0 : index
      %c0_21 = arith.constant 0 : index
      %42 = vector.load %arg3[%c0_19, %c0_20, %c0_21] : memref<1x8x128xf32, #tpu.memory_space<vmem>>, vector<1x8x128xf32>
      tpu.vector_store %arg3[%c0_19, %c0_20, %c0_21], %41 {strides = array<i32>} : memref<1x8x128xf32, #tpu.memory_space<vmem>>, vector<1x8x128xf32>,
    } else {
    }
    return
  }
  func.func @transform_0(%arg0: i32) -> (i32, i32) {
    %c0_i32 = arith.constant 0 : i32
    %c0_i32_0 = arith.constant 0 : i32
    return %arg0, %c0_i32 : i32, i32
  }
  func.func @transform_1(%arg0: i32) -> (i32, i32) {
    %c0_i32 = arith.constant 0 : i32
    %c0_i32_0 = arith.constant 0 : i32
    return %arg0, %c0_i32 : i32, i32
  }
  func.func @transform_2(%arg0: i32) -> (i32, i32, i32) {
    %c0_i32 = arith.constant 0 : i32
    %c0_i32_0 = arith.constant 0 : i32
    %c0_i32_1 = arith.constant 0 : i32
    %c0_i32_2 = arith.constant 0 : i32
    return %c0_i32, %c0_i32_0, %c0_i32_1 : i32, i32, i32
  }
}

</mosaic_0001>

<llo_original>
// kernel: tpu_custom_call.1
$region0: #{tpu_custom_call.1}
  #allocation0 [shape = 'u32[]', space=smem, size = 0x4, offset = 0x4, fixed_abs, tag = 'smem constant byte address 0x4 - core index']
  #allocation1 [shape = 'u32[144,128]{1,0:T(1,128)}', space=vmem, size = 0x12000, scoped, tag = 'internal scratch']
  #allocation2 [shape = 'f32[1,1]{1,0:T(1,128)}', space=vmem, size = 0x200, scoped, tag = 'scratch operand']
  %s0 = inlined_call_operand.hbm [shape: f32[16,256], index: 0, kind: input, shape index: {}]
  %s1 = inlined_call_operand.hbm [shape: f32[16,256], index: 1, kind: input, shape index: {}]
  %s2 = inlined_call_operand.hbm [shape: f32[1,8,128], index: 2, kind: output, shape index: {}]
  %s3 = sld [smem:[#allocation0]]
  $region34: #{tpu_custom_call.1} parent=0
    _
  %s5 = ssub.s32 1, %s3
  %s6 = scalar_select 0, %s5, %s3
  $region1: #{tpu_custom_call.1} parent=0
    #allocation3 [shape = 'u8[16384]{0}', space=vmem, size = 0x4000, scoped, tag = 'input window, operand 0, single buffered']
    #allocation4 [shape = 's32[1]{0}', space=sflag, size = 0x4, scoped, tag = 'scoped memory for tpu_custom_call.1']
    #allocation5 [shape = 's32[1]{0}', space=sflag, size = 0x4, scoped, tag = 'scoped memory for tpu_custom_call.1']
    #allocation6 [shape = 'u8[16384]{0}', space=vmem, size = 0x4000, scoped, tag = 'input window, operand 1, single buffered']
    #allocation7 [shape = 's32[1]{0}', space=sflag, size = 0x4, scoped, tag = 'scoped memory for tpu_custom_call.1']
    #allocation8 [shape = 'u8[4096]{0}', space=vmem, size = 0x1000, scoped, tag = 'output window, operand 0, single buffered']
    %7 = vsyncpa [#allocation4], 0
    %8 = vsyncpa [#allocation7], 0
    %9 = vsyncpa [#allocation5], 0
    // Predicated region
    $region2: #{tpu_custom_call.1} parent=1 // pred_check
      _
    $region3: #{tpu_custom_call.1} parent=1 // pred_check_branch
      %11 = sbr.rel (0) target = $region5
    $region4: #{tpu_custom_call.1} parent=1 // pred_region
      %s13 = ssub.s32 512, 512
      %14 = vsyncadd [#allocation4], %s13
      %s15 = sshll.u32 [#allocation3], 4
      %s16 = int_to_ptr.vmem [resolvable:$true] %s15
      %21 = dma.hbm_to_vmem [thread:$0]  %s0, 512, %s16, [#allocation4], 256, 256, 16
    $region5: #{tpu_custom_call.1} parent=1 // pred_fallthru
      _
    // Predicated region
    $region6: #{tpu_custom_call.1} parent=1 // pred_check
      _
    $region7: #{tpu_custom_call.1} parent=1 // pred_check_branch
      %23 = sbr.rel (0) target = $region9
    $region8: #{tpu_custom_call.1} parent=1 // pred_region
      %s25 = ssub.s32 512, 512
      %26 = vsyncadd [#allocation7], %s25
      %s27 = sshll.u32 [#allocation6], 4
      %s28 = int_to_ptr.vmem [resolvable:$true] %s27
      %33 = dma.hbm_to_vmem [thread:$0]  %s1, 512, %s28, [#allocation7], 256, 256, 16
    $region9: #{tpu_custom_call.1} parent=1 // pred_fallthru
      _
    // Predicated region
    $region10: #{tpu_custom_call.1} parent=1 // pred_check
      _
    $region11: #{tpu_custom_call.1} parent=1 // pred_check_branch
      %35 = sbr.rel (0) target = $region13
    $region12: #{tpu_custom_call.1} parent=1 // pred_region
      %36 = dma.done [#allocation4], 512
    $region13: #{tpu_custom_call.1} parent=1 // pred_fallthru
      _
    // Predicated region
    $region14: #{tpu_custom_call.1} parent=1 // pred_check
      _
    $region15: #{tpu_custom_call.1} parent=1 // pred_check_branch
      %38 = sbr.rel (0) target = $region17
    $region16: #{tpu_custom_call.1} parent=1 // pred_region
      %39 = dma.done [#allocation7], 512
    $region17: #{tpu_custom_call.1} parent=1 // pred_fallthru
      _
    %p40 = scmp.eq.s32.totalorder 0, 0
    // Predicated region
    $region18: #{tpu_custom_call.1} parent=1 // pred_check
      %p41 = pneg %p40
    $region19: #{tpu_custom_call.1} parent=1 // pred_check_branch
      %43 = sbr.rel (%p41) target = $region21
    $region20: #{tpu_custom_call.1} parent=1 // pred_region
      %vm44 = vcmask 0
      %45 = vst.msk [vmem:[#allocation2] sm:$0x1] %vm44, 0.0
    $region21: #{tpu_custom_call.1} parent=1 // pred_fallthru
      _
    %v46 = vld [vmem:[#allocation3] sm:$0xff]
    %v47 = vld [vmem:[#allocation3 + $0x8] sm:$0xff]
    %v48 = vld [vmem:[#allocation3 + $0x10] sm:$0xff]
    %v49 = vld [vmem:[#allocation3 + $0x18] sm:$0xff]
    %v50 = vld [vmem:[#allocation6] sm:$0xff]
    %v51 = vld [vmem:[#allocation6 + $0x8] sm:$0xff]
    %v52 = vld [vmem:[#allocation6 + $0x10] sm:$0xff]
    %v53 = vld [vmem:[#allocation6 + $0x18] sm:$0xff]
    %v54 = vmul.f32 %v46, %v50
    %v55 = vmul.f32 %v47, %v51
    %v56 = vmul.f32 %v48, %v52
    %v57 = vmul.f32 %v49, %v53
    %v58 = vadd.f32 %v54, %v55
    %59 = vadd.xlane.f32.xlu0 %v58
    %v60 = vpop.xlane.xlu0 %59
    %v61 = vadd.f32 %v56, %v57
    %62 = vadd.xlane.f32.xlu0 %v61
    %v63 = vpop.xlane.xlu0 %62
    %v64 = vmul.f32 %v46, %v46
    %v65 = vmul.f32 %v47, %v47
    %v66 = vmul.f32 %v48, %v48
    %v67 = vmul.f32 %v49, %v49
    %v68 = vadd.f32 %v64, %v65
    %69 = vadd.xlane.f32.xlu0 %v68
    %v70 = vpop.xlane.xlu0 %69
    %v71 = vadd.f32 %v66, %v67
    %72 = vadd.xlane.f32.xlu0 %v71
    %v73 = vpop.xlane.xlu0 %72
    %v74 = vmul.f32 %v50, %v50
    %v75 = vmul.f32 %v51, %v51
    %v76 = vmul.f32 %v52, %v52
    %v77 = vmul.f32 %v53, %v53
    %v78 = vadd.f32 %v74, %v75
    %79 = vadd.xlane.f32.xlu0 %v78
    %v80 = vpop.xlane.xlu0 %79
    %v81 = vadd.f32 %v76, %v77
    %82 = vadd.xlane.f32.xlu0 %v81
    %v83 = vpop.xlane.xlu0 %82
    %v84 = vmul.f32 %v70, %v80
    %v85 = vmul.f32 %v73, %v83
    %v86 = vmax.f32 %v84, 1e-16
    %v87 = vmax.f32 %v85, 1e-16
    %v88 = vrsqrt.pop %v86
    %v89 = vrsqrt.pop %v87
    %v90 = vmul.f32 %v60, %v88
    %v91 = vmul.f32 %v63, %v89
    %s92 = smul.u32 0, 16
    %v93 = vlaneseq
    %v94 = vshrl.u32 %v93, 7
    %v95 = vadd.s32 %v94, 8
    %v96 = vstv %s92
    %v97 = vadd.s32 %v96, %v94
    %v98 = vadd.s32 %v96, %v95
    %vm99 = vcmp.lt.s32.totalorder %v97, 16
    %vm100 = vcmp.lt.s32.totalorder %v98, 16
    %v101 = vsel %vm99, %v90, 0.0
    %v102 = vsel %vm100, %v91, 0.0
    %v103 = vld [vmem:[#allocation2] sm:$0x1]
    %vm104 = vcmask 7168
    %v105 = vsel %vm104, %v101, 0.0
    %v106 = vsel %vm104, %v102, 0.0
    %v107 = vadd.f32 %v105, %v106
    %108 = vadd.xlane.f32.xlu0 %v107
    %v109 = vpop.xlane.xlu0 %108
    %v110 = vrot.slane %v109, 4
    %v111 = vadd.f32 %v109, %v110
    %v112 = vrot.slane %v111, 2
    %v113 = vadd.f32 %v111, %v112
    %v114 = vrot.slane %v113, 1
    %v115 = vadd.f32 %v113, %v114
    %s116 = vtos %v115
    %v117 = vstv %s116
    %v118 = vadd.f32 %v103, %v117
    %vm119 = vcmask 0
    %120 = vst.msk [vmem:[#allocation2] sm:$0x1] %vm119, %v118
    // Predicated region
    $region22: #{tpu_custom_call.1} parent=1 // pred_check
      %p121 = pneg %p40
    $region23: #{tpu_custom_call.1} parent=1 // pred_check_branch
      %123 = sbr.rel (%p121) target = $region25
    $region24: #{tpu_custom_call.1} parent=1 // pred_region
      %v124 = vld [vmem:[#allocation2] sm:$0x1]
      %v126 = vlaneseq
      %v127 = vshrl.u32 %v126, 7
      %v128 = vsub.s32 0, %v127
      %v129 = vrot.slane %v124, %v128
      %130 = vset.pattern.permute.xlu0 0
      %131 = vperm.xlu0 %130, %v129
      %v132 = vpop.permute.xlu0 %131
      %134 = vst [vmem:[#allocation8] sm:$0xff] %v132
    $region25: #{tpu_custom_call.1} parent=1 // pred_fallthru
      _
    // Predicated region
    $region26: #{tpu_custom_call.1} parent=1 // pred_check
      _
    $region27: #{tpu_custom_call.1} parent=1 // pred_check_branch
      %136 = sbr.rel (0) target = $region29
    $region28: #{tpu_custom_call.1} parent=1 // pred_region
      %s138 = ssub.s32 128, 128
      %139 = vsyncadd [#allocation5], %s138
      %s141 = sshll.u32 [#allocation8], 4
      %s142 = int_to_ptr.vmem [resolvable:$true] %s141
      %144 = dma.vmem_to_hbm [thread:$0]  %s142, 128, %s2, [#allocation5]
    $region29: #{tpu_custom_call.1} parent=1 // pred_fallthru
      _
    // Predicated region
    $region30: #{tpu_custom_call.1} parent=1 // pred_check
      _
    $region31: #{tpu_custom_call.1} parent=1 // pred_check_branch
      %146 = sbr.rel (0) target = $region33
    $region32: #{tpu_custom_call.1} parent=1 // pred_region
      %147 = dma.done [#allocation5], 128
    $region33: #{tpu_custom_call.1} parent=1 // pred_fallthru
      _
    %148 = vsyncpa [#allocation4], 1
    %149 = vsyncpa [#allocation7], 1
    %150 = vsyncpa [#allocation5], 1

</llo_original>
